<compile_context>
chip_gen: v7x
topology: tpu7x:2x2x1
jax: 0.10.0
libtpu: 0.0.40
codegen_flags: <defaults>
</compile_context>

<pallas_src>
import functools

import jax
import jax.numpy as jnp
from jax import lax
from jax.experimental import pallas as pl
from jax.experimental.pallas import tpu as pltpu


def _round_up(x, m):
    return (x + m - 1) // m * m


# ----------------------------- Pallas kernel ------------------------------- #
def _conv_bn_relu_kernel(x_ref, w_ref, b_ref, o_ref, col_ref, *,
                         n_batch, c, k, wp, l_acc, oh, ow):
    # x_ref:   (N, C, S_in)      bf16 flattened zero-padded images (+ halo tail)
    # w_ref:   (O, k*k*C)        bf16 BN-scale-folded conv weights (tap-major K)
    # b_ref:   (O, 1)            f32  folded conv-bias + BN shift
    # o_ref:   (N, O, OH*OW)     f32  lane-dense valid interior
    # col_ref: (k*k*C, N*l_acc)  bf16 VMEM scratch: stacked shifted views
    #
    # 1) Stack the 9 taps (and the batch) into one contraction operand.
    for n in range(n_batch):
        xi = x_ref[n]                                    # (C, S_in)
        for kh in range(k):
            for kw in range(k):
                tap = kh * k + kw
                s = kh * wp + kw                         # static lane offset
                col_ref[tap * c:(tap + 1) * c,
                        n * l_acc:(n + 1) * l_acc] = xi[:, s:s + l_acc]

    # 2) One MXU matmul, f32 accumulation, then bias + ReLU epilogue.
    acc = jnp.dot(w_ref[...], col_ref[...],
                  preferred_element_type=jnp.float32)    # (O, N*l_acc) f32
    acc = jnp.maximum(acc + b_ref[...], 0.0)

    # 3) Compact the valid interior rows (stride Wp -> stride OW) so the HBM
    #    writeback is a lane-dense, unpadded block and no XLA de-pad is needed.
    for n in range(n_batch):
        for r in range(oh):
            src = n * l_acc + r * wp
            o_ref[n, :, r * ow:(r + 1) * ow] = (
                acc[:, src:src + ow].astype(o_ref.dtype))


# --------------------------- parameter folding ------------------------------ #
def fold_conv_bn_params(weight, conv_bias, gamma, beta, running_mean,
                        running_var, *, eps=1e-5):
    """Fold BN(eval) into the conv once, at parameter-load time.

    weight: (O, C, 3, 3). Returns (w_stacked (O, 9*C) bf16, bias (O, 1) f32).
    """
    # TODO(synk): BatchNorm2d training-mode batch statistics are not modeled;
    # inference-mode running statistics are used (matches the reference here).
    O, C, kh, kw = weight.shape
    scale = gamma / jnp.sqrt(running_var + eps)
    w_scaled = weight * scale[:, None, None, None]                  # (O,C,3,3)
    # K layout must match the scratch rows: row = (kh*k + kw) * C + c.
    w_stacked = w_scaled.transpose(0, 2, 3, 1).reshape(O, kh * kw * C)
    w_stacked = w_stacked.astype(jnp.bfloat16)
    bias = ((conv_bias - running_mean) * scale + beta).reshape(O, 1)
    return w_stacked, bias.astype(jnp.float32)


# ------------------------------ JAX wrapper --------------------------------- #
@jax.jit
def conv_relu(x, w_stacked, bias):
    """ConvRelu forward: conv3x3(pad=1, bias) -> BatchNorm2d(eval) -> ReLU.

    x: (N, C, H, W) f32; w_stacked/bias from fold_conv_bn_params.
    Returns (N, O, H, W) f32.
    """
    N, C, H, W = x.shape
    O = w_stacked.shape[0]
    k, p = 3, 1
    Hp, Wp = H + 2 * p, W + 2 * p
    OH, OW = H, W
    OHOW = OH * OW

    # Per-image accumulator width (lane-dense, 128-multiple): covers all valid
    # output positions q = oh*Wp + ow.
    l_acc = _round_up((OH - 1) * Wp + OW, 128)
    s_max = (k - 1) * Wp + (k - 1)           # largest static tap offset
    need = s_max + l_acc                     # lanes every tap slice may touch
    rows = -(-need // Wp)                    # padded rows so slices stay in-bounds
    pad_bottom = rows - H - p
    s_in = rows * Wp
    # TODO(synk): for large images / channel counts (esp. v7x's 64 MiB VMEM)
    # this whole-image, whole-batch block needs an L-tile (+ (k-1)*Wp+(k-1)
    # halo), an O-tile grid axis and an explicit vmem_limit_bytes; not needed
    # at these sizes.
    # TODO(synk): on v7x a leading core-parallel axis (pltpu.CORE_PARALLEL /
    # pl.core_map) over the batch would use both TensorCores for larger N.

    # Cast to bf16 first, then a single fused pad provides both the conv zero
    # border and the halo tail rows (one HBM pass, half the bytes of f32).
    x_flat = jnp.pad(
        x.astype(jnp.bfloat16),
        ((0, 0), (0, 0), (p, pad_bottom), (p, p)),
    ).reshape(N, C, s_in)

    kernel = functools.partial(
        _conv_bn_relu_kernel,
        n_batch=N, c=C, k=k, wp=Wp, l_acc=l_acc, oh=OH, ow=OW)

    flops = 2 * O * (k * k * C) * (N * l_acc)
    bytes_accessed = (x_flat.size * 2 + w_stacked.size * 2 + bias.size * 4
                      + N * O * OHOW * 4)

    out = pl.pallas_call(
        kernel,
        out_shape=jax.ShapeDtypeStruct((N, O, OHOW), jnp.float32),
        grid_spec=pltpu.PrefetchScalarGridSpec(
            num_scalar_prefetch=0,
            grid=(1,),
            in_specs=[
                pl.BlockSpec((N, C, s_in), lambda i: (0, 0, 0)),
                pl.BlockSpec((O, k * k * C), lambda i: (0, 0)),
                pl.BlockSpec((O, 1), lambda i: (0, 0)),
            ],
            out_specs=pl.BlockSpec((N, O, OHOW), lambda i: (0, 0, 0)),
            scratch_shapes=[pltpu.VMEM((k * k * C, N * l_acc), jnp.bfloat16)],
        ),
        compiler_params=pltpu.CompilerParams(
            dimension_semantics=("arbitrary",),
        ),
        cost_estimate=pl.CostEstimate(flops=flops, transcendentals=0,
                                      bytes_accessed=bytes_accessed),
    )(x_flat, w_stacked, bias)

    # (N, O, OH*OW) -> NCHW: pure metadata reshape, no copy / transpose.
    return out.reshape(N, O, OH, OW)


# ------------------------------ reference ----------------------------------- #
def conv_relu_ref(x, weight, conv_bias, gamma, beta, running_mean, running_var,
                  *, eps=1e-5):
    y = lax.conv_general_dilated(
        x, weight,
        window_strides=(1, 1),
        padding=[(1, 1), (1, 1)],
        dimension_numbers=("NCHW", "OIHW", "NCHW"),
    )
    y = y + conv_bias[None, :, None, None]
    scale = gamma / jnp.sqrt(running_var + eps)
    y = (y - running_mean[None, :, None, None]) * scale[None, :, None, None] \
        + beta[None, :, None, None]
    return jnp.maximum(y, 0.0)


# -------------------------------- main --------------------------------------- #
if __name__ == "__main__":
    key = jax.random.PRNGKey(0)
    kx, kw, kcb, kg, kb, km, kv = jax.random.split(key, 7)

    # ConvRelu(in_=4, out=8) at small spatial size.
    N, C, H, W, O = 2, 4, 16, 16, 8

    x = jax.random.normal(kx, (N, C, H, W), dtype=jnp.float32)
    weight = jax.random.normal(kw, (O, C, 3, 3), dtype=jnp.float32) * 0.1
    conv_bias = jax.random.normal(kcb, (O,), dtype=jnp.float32) * 0.1
    gamma = 1.0 + 0.1 * jax.random.normal(kg, (O,), dtype=jnp.float32)
    beta = 0.1 * jax.random.normal(kb, (O,), dtype=jnp.float32)
    running_mean = 0.1 * jax.random.normal(km, (O,), dtype=jnp.float32)
    running_var = jax.random.uniform(kv, (O,), dtype=jnp.float32,
                                     minval=0.5, maxval=1.5)

    # Fold BN into the conv once (parameter-load time, not per forward call).
    w_stacked, bias = fold_conv_bn_params(
        weight, conv_bias, gamma, beta, running_mean, running_var)
    w_stacked = jax.block_until_ready(w_stacked)
    bias = jax.block_until_ready(bias)

    out = conv_relu(x, w_stacked, bias)
    out = jax.block_until_ready(out)

    ref = conv_relu_ref(x, weight, conv_bias, gamma, beta,
                        running_mean, running_var)
    assert out.shape == (N, O, H, W), f"bad shape {out.shape}"
    # bf16 operands with f32 accumulation -> loose tolerance vs f32 reference.
    assert jnp.allclose(out, ref, atol=2e-2, rtol=2e-2), "mismatch vs reference"

    print("KERNEL_OK")
</pallas_src>

<mosaic_0001>
module attributes {stable_mosaic.version = 11 : i64} {
  func.func @_conv_bn_relu_kernel(%arg0: i32, %arg1: memref<2x4x432xbf16, #tpu.memory_space<vmem>>, %arg2: memref<8x36xbf16, #tpu.memory_space<vmem>>, %arg3: memref<8x1xf32, #tpu.memory_space<vmem>>, %arg4: memref<2x8x256xf32, #tpu.memory_space<vmem>>, %arg5: memref<36x768xbf16, #tpu.memory_space<vmem>>) attributes {dimension_semantics = [#tpu.dimension_semantics<arbitrary>], iteration_bounds = array<i64: 1>, scalar_prefetch = 0 : i64, scratch_operands = 1 : i64, tpu.core_type = #tpu.core_type<tc>, window_params = [{pipeline_mode = #tpu.pipeline_mode<synchronous>, transform_indices = @transform_0, window_bounds = array<i64: 2, 4, 432>}, {pipeline_mode = #tpu.pipeline_mode<synchronous>, transform_indices = @transform_1, window_bounds = array<i64: 8, 36>}, {pipeline_mode = #tpu.pipeline_mode<synchronous>, transform_indices = @transform_2, window_bounds = array<i64: 8, 1>}, {pipeline_mode = #tpu.pipeline_mode<synchronous>, transform_indices = @transform_3, window_bounds = array<i64: 2, 8, 256>}]} {
    %c0 = arith.constant 0 : index
    %c0_0 = arith.constant 0 : index
    %c0_1 = arith.constant 0 : index
    %0 = vector.load %arg1[%c0, %c0_0, %c0_1] : memref<2x4x432xbf16, #tpu.memory_space<vmem>>, vector<1x4x432xbf16>
    %1 = vector.shape_cast %0 : vector<1x4x432xbf16> to vector<4x432xbf16>
    %2 = vector.extract_strided_slice %1 {offsets = [0, 0], sizes = [4, 384], strides = [1, 1]} : vector<4x432xbf16> to vector<4x384xbf16>
    %c0_2 = arith.constant 0 : index
    %c0_3 = arith.constant 0 : index
    %3 = vector.load %arg5[%c0_2, %c0_3] : memref<36x768xbf16, #tpu.memory_space<vmem>>, vector<4x384xbf16>
    tpu.vector_store %arg5[%c0_2, %c0_3], %2 {strides = array<i32>} : memref<36x768xbf16, #tpu.memory_space<vmem>>, vector<4x384xbf16>,
    %4 = vector.extract_strided_slice %1 {offsets = [0, 1], sizes = [4, 384], strides = [1, 1]} : vector<4x432xbf16> to vector<4x384xbf16>
    %c4 = arith.constant 4 : index
    %c0_4 = arith.constant 0 : index
    %5 = vector.load %arg5[%c4, %c0_4] : memref<36x768xbf16, #tpu.memory_space<vmem>>, vector<4x384xbf16>
    tpu.vector_store %arg5[%c4, %c0_4], %4 {strides = array<i32>} : memref<36x768xbf16, #tpu.memory_space<vmem>>, vector<4x384xbf16>,
    %6 = vector.extract_strided_slice %1 {offsets = [0, 2], sizes = [4, 384], strides = [1, 1]} : vector<4x432xbf16> to vector<4x384xbf16>
    %c8 = arith.constant 8 : index
    %c0_5 = arith.constant 0 : index
    %7 = vector.load %arg5[%c8, %c0_5] : memref<36x768xbf16, #tpu.memory_space<vmem>>, vector<4x384xbf16>
    tpu.vector_store %arg5[%c8, %c0_5], %6 {strides = array<i32>} : memref<36x768xbf16, #tpu.memory_space<vmem>>, vector<4x384xbf16>,
    %8 = vector.extract_strided_slice %1 {offsets = [0, 18], sizes = [4, 384], strides = [1, 1]} : vector<4x432xbf16> to vector<4x384xbf16>
    %c12 = arith.constant 12 : index
    %c0_6 = arith.constant 0 : index
    %9 = vector.load %arg5[%c12, %c0_6] : memref<36x768xbf16, #tpu.memory_space<vmem>>, vector<4x384xbf16>
    tpu.vector_store %arg5[%c12, %c0_6], %8 {strides = array<i32>} : memref<36x768xbf16, #tpu.memory_space<vmem>>, vector<4x384xbf16>,
    %10 = vector.extract_strided_slice %1 {offsets = [0, 19], sizes = [4, 384], strides = [1, 1]} : vector<4x432xbf16> to vector<4x384xbf16>
    %c16 = arith.constant 16 : index
    %c0_7 = arith.constant 0 : index
    %11 = vector.load %arg5[%c16, %c0_7] : memref<36x768xbf16, #tpu.memory_space<vmem>>, vector<4x384xbf16>
    tpu.vector_store %arg5[%c16, %c0_7], %10 {strides = array<i32>} : memref<36x768xbf16, #tpu.memory_space<vmem>>, vector<4x384xbf16>,
    %12 = vector.extract_strided_slice %1 {offsets = [0, 20], sizes = [4, 384], strides = [1, 1]} : vector<4x432xbf16> to vector<4x384xbf16>
    %c20 = arith.constant 20 : index
    %c0_8 = arith.constant 0 : index
    %13 = vector.load %arg5[%c20, %c0_8] : memref<36x768xbf16, #tpu.memory_space<vmem>>, vector<4x384xbf16>
    tpu.vector_store %arg5[%c20, %c0_8], %12 {strides = array<i32>} : memref<36x768xbf16, #tpu.memory_space<vmem>>, vector<4x384xbf16>,
    %14 = vector.extract_strided_slice %1 {offsets = [0, 36], sizes = [4, 384], strides = [1, 1]} : vector<4x432xbf16> to vector<4x384xbf16>
    %c24 = arith.constant 24 : index
    %c0_9 = arith.constant 0 : index
    %15 = vector.load %arg5[%c24, %c0_9] : memref<36x768xbf16, #tpu.memory_space<vmem>>, vector<4x384xbf16>
    tpu.vector_store %arg5[%c24, %c0_9], %14 {strides = array<i32>} : memref<36x768xbf16, #tpu.memory_space<vmem>>, vector<4x384xbf16>,
    %16 = vector.extract_strided_slice %1 {offsets = [0, 37], sizes = [4, 384], strides = [1, 1]} : vector<4x432xbf16> to vector<4x384xbf16>
    %c28 = arith.constant 28 : index
    %c0_10 = arith.constant 0 : index
    %17 = vector.load %arg5[%c28, %c0_10] : memref<36x768xbf16, #tpu.memory_space<vmem>>, vector<4x384xbf16>
    tpu.vector_store %arg5[%c28, %c0_10], %16 {strides = array<i32>} : memref<36x768xbf16, #tpu.memory_space<vmem>>, vector<4x384xbf16>,
    %18 = vector.extract_strided_slice %1 {offsets = [0, 38], sizes = [4, 384], strides = [1, 1]} : vector<4x432xbf16> to vector<4x384xbf16>
    %c32 = arith.constant 32 : index
    %c0_11 = arith.constant 0 : index
    %19 = vector.load %arg5[%c32, %c0_11] : memref<36x768xbf16, #tpu.memory_space<vmem>>, vector<4x384xbf16>
    tpu.vector_store %arg5[%c32, %c0_11], %18 {strides = array<i32>} : memref<36x768xbf16, #tpu.memory_space<vmem>>, vector<4x384xbf16>,
    %c1 = arith.constant 1 : index
    %c0_12 = arith.constant 0 : index
    %c0_13 = arith.constant 0 : index
    %20 = vector.load %arg1[%c1, %c0_12, %c0_13] : memref<2x4x432xbf16, #tpu.memory_space<vmem>>, vector<1x4x432xbf16>
    %21 = vector.shape_cast %20 : vector<1x4x432xbf16> to vector<4x432xbf16>
    %22 = vector.extract_strided_slice %21 {offsets = [0, 0], sizes = [4, 384], strides = [1, 1]} : vector<4x432xbf16> to vector<4x384xbf16>
    %c0_14 = arith.constant 0 : index
    %c384 = arith.constant 384 : index
    %23 = vector.load %arg5[%c0_14, %c384] : memref<36x768xbf16, #tpu.memory_space<vmem>>, vector<4x384xbf16>
    tpu.vector_store %arg5[%c0_14, %c384], %22 {strides = array<i32>} : memref<36x768xbf16, #tpu.memory_space<vmem>>, vector<4x384xbf16>,
    %24 = vector.extract_strided_slice %21 {offsets = [0, 1], sizes = [4, 384], strides = [1, 1]} : vector<4x432xbf16> to vector<4x384xbf16>
    %c4_15 = arith.constant 4 : index
    %c384_16 = arith.constant 384 : index
    %25 = vector.load %arg5[%c4_15, %c384_16] : memref<36x768xbf16, #tpu.memory_space<vmem>>, vector<4x384xbf16>
    tpu.vector_store %arg5[%c4_15, %c384_16], %24 {strides = array<i32>} : memref<36x768xbf16, #tpu.memory_space<vmem>>, vector<4x384xbf16>,
    %26 = vector.extract_strided_slice %21 {offsets = [0, 2], sizes = [4, 384], strides = [1, 1]} : vector<4x432xbf16> to vector<4x384xbf16>
    %c8_17 = arith.constant 8 : index
    %c384_18 = arith.constant 384 : index
    %27 = vector.load %arg5[%c8_17, %c384_18] : memref<36x768xbf16, #tpu.memory_space<vmem>>, vector<4x384xbf16>
    tpu.vector_store %arg5[%c8_17, %c384_18], %26 {strides = array<i32>} : memref<36x768xbf16, #tpu.memory_space<vmem>>, vector<4x384xbf16>,
    %28 = vector.extract_strided_slice %21 {offsets = [0, 18], sizes = [4, 384], strides = [1, 1]} : vector<4x432xbf16> to vector<4x384xbf16>
    %c12_19 = arith.constant 12 : index
    %c384_20 = arith.constant 384 : index
    %29 = vector.load %arg5[%c12_19, %c384_20] : memref<36x768xbf16, #tpu.memory_space<vmem>>, vector<4x384xbf16>
    tpu.vector_store %arg5[%c12_19, %c384_20], %28 {strides = array<i32>} : memref<36x768xbf16, #tpu.memory_space<vmem>>, vector<4x384xbf16>,
    %30 = vector.extract_strided_slice %21 {offsets = [0, 19], sizes = [4, 384], strides = [1, 1]} : vector<4x432xbf16> to vector<4x384xbf16>
    %c16_21 = arith.constant 16 : index
    %c384_22 = arith.constant 384 : index
    %31 = vector.load %arg5[%c16_21, %c384_22] : memref<36x768xbf16, #tpu.memory_space<vmem>>, vector<4x384xbf16>
    tpu.vector_store %arg5[%c16_21, %c384_22], %30 {strides = array<i32>} : memref<36x768xbf16, #tpu.memory_space<vmem>>, vector<4x384xbf16>,
    %32 = vector.extract_strided_slice %21 {offsets = [0, 20], sizes = [4, 384], strides = [1, 1]} : vector<4x432xbf16> to vector<4x384xbf16>
    %c20_23 = arith.constant 20 : index
    %c384_24 = arith.constant 384 : index
    %33 = vector.load %arg5[%c20_23, %c384_24] : memref<36x768xbf16, #tpu.memory_space<vmem>>, vector<4x384xbf16>
    tpu.vector_store %arg5[%c20_23, %c384_24], %32 {strides = array<i32>} : memref<36x768xbf16, #tpu.memory_space<vmem>>, vector<4x384xbf16>,
    %34 = vector.extract_strided_slice %21 {offsets = [0, 36], sizes = [4, 384], strides = [1, 1]} : vector<4x432xbf16> to vector<4x384xbf16>
    %c24_25 = arith.constant 24 : index
    %c384_26 = arith.constant 384 : index
    %35 = vector.load %arg5[%c24_25, %c384_26] : memref<36x768xbf16, #tpu.memory_space<vmem>>, vector<4x384xbf16>
    tpu.vector_store %arg5[%c24_25, %c384_26], %34 {strides = array<i32>} : memref<36x768xbf16, #tpu.memory_space<vmem>>, vector<4x384xbf16>,
    %36 = vector.extract_strided_slice %21 {offsets = [0, 37], sizes = [4, 384], strides = [1, 1]} : vector<4x432xbf16> to vector<4x384xbf16>
    %c28_27 = arith.constant 28 : index
    %c384_28 = arith.constant 384 : index
    %37 = vector.load %arg5[%c28_27, %c384_28] : memref<36x768xbf16, #tpu.memory_space<vmem>>, vector<4x384xbf16>
    tpu.vector_store %arg5[%c28_27, %c384_28], %36 {strides = array<i32>} : memref<36x768xbf16, #tpu.memory_space<vmem>>, vector<4x384xbf16>,
    %38 = vector.extract_strided_slice %21 {offsets = [0, 38], sizes = [4, 384], strides = [1, 1]} : vector<4x432xbf16> to vector<4x384xbf16>
    %c32_29 = arith.constant 32 : index
    %c384_30 = arith.constant 384 : index
    %39 = vector.load %arg5[%c32_29, %c384_30] : memref<36x768xbf16, #tpu.memory_space<vmem>>, vector<4x384xbf16>
    tpu.vector_store %arg5[%c32_29, %c384_30], %38 {strides = array<i32>} : memref<36x768xbf16, #tpu.memory_space<vmem>>, vector<4x384xbf16>,
    %c0_31 = arith.constant 0 : index
    %c0_32 = arith.constant 0 : index
    %40 = vector.load %arg2[%c0_31, %c0_32] : memref<8x36xbf16, #tpu.memory_space<vmem>>, vector<8x36xbf16>
    %c0_33 = arith.constant 0 : index
    %c0_34 = arith.constant 0 : index
    %41 = vector.load %arg5[%c0_33, %c0_34] : memref<36x768xbf16, #tpu.memory_space<vmem>>, vector<36x768xbf16>
    %cst = arith.constant dense<0.000000e+00> : vector<8x768xf32>
    %42 = tpu.matmul %40, %41, %cst {dimension_numbers = #tpu.dot_dimension_numbers<[1], [0], [0], [1], [0, 0, 1, 1], [], []>} : vector<8x36xbf16>, vector<36x768xbf16>, vector<8x768xf32> -> vector<8x768xf32>
    %c0_35 = arith.constant 0 : index
    %c0_36 = arith.constant 0 : index
    %43 = vector.load %arg3[%c0_35, %c0_36] : memref<8x1xf32, #tpu.memory_space<vmem>>, vector<8x1xf32>
    %44 = vector.broadcast %43 : vector<8x1xf32> to vector<8x768xf32>
    %45 = arith.addf %42, %44 : vector<8x768xf32>
    %cst_37 = arith.constant 0.000000e+00 : f32
    %46 = vector.broadcast %cst_37 : f32 to vector<8x768xf32>
    %47 = arith.maximumf %45, %46 : vector<8x768xf32>
    %48 = vector.extract_strided_slice %47 {offsets = [0, 0], sizes = [8, 16], strides = [1, 1]} : vector<8x768xf32> to vector<8x16xf32>
    %c0_38 = arith.constant 0 : index
    %c0_39 = arith.constant 0 : index
    %c0_40 = arith.constant 0 : index
    %49 = vector.load %arg4[%c0_38, %c0_39, %c0_40] : memref<2x8x256xf32, #tpu.memory_space<vmem>>, vector<1x8x16xf32>
    %50 = vector.shape_cast %49 : vector<1x8x16xf32> to vector<8x16xf32>
    %51 = vector.shape_cast %48 : vector<8x16xf32> to vector<1x8x16xf32>
    tpu.vector_store %arg4[%c0_38, %c0_39, %c0_40], %51 {strides = array<i32>} : memref<2x8x256xf32, #tpu.memory_space<vmem>>, vector<1x8x16xf32>,
    %52 = vector.extract_strided_slice %47 {offsets = [0, 18], sizes = [8, 16], strides = [1, 1]} : vector<8x768xf32> to vector<8x16xf32>
    %c0_41 = arith.constant 0 : index
    %c0_42 = arith.constant 0 : index
    %c16_43 = arith.constant 16 : index
    %53 = vector.load %arg4[%c0_41, %c0_42, %c16_43] : memref<2x8x256xf32, #tpu.memory_space<vmem>>, vector<1x8x16xf32>
    %54 = vector.shape_cast %53 : vector<1x8x16xf32> to vector<8x16xf32>
    %55 = vector.shape_cast %52 : vector<8x16xf32> to vector<1x8x16xf32>
    tpu.vector_store %arg4[%c0_41, %c0_42, %c16_43], %55 {strides = array<i32>} : memref<2x8x256xf32, #tpu.memory_space<vmem>>, vector<1x8x16xf32>,
    %56 = vector.extract_strided_slice %47 {offsets = [0, 36], sizes = [8, 16], strides = [1, 1]} : vector<8x768xf32> to vector<8x16xf32>
    %c0_44 = arith.constant 0 : index
    %c0_45 = arith.constant 0 : index
    %c32_46 = arith.constant 32 : index
    %57 = vector.load %arg4[%c0_44, %c0_45, %c32_46] : memref<2x8x256xf32, #tpu.memory_space<vmem>>, vector<1x8x16xf32>
    %58 = vector.shape_cast %57 : vector<1x8x16xf32> to vector<8x16xf32>
    %59 = vector.shape_cast %56 : vector<8x16xf32> to vector<1x8x16xf32>
    tpu.vector_store %arg4[%c0_44, %c0_45, %c32_46], %59 {strides = array<i32>} : memref<2x8x256xf32, #tpu.memory_space<vmem>>, vector<1x8x16xf32>,
    %60 = vector.extract_strided_slice %47 {offsets = [0, 54], sizes = [8, 16], strides = [1, 1]} : vector<8x768xf32> to vector<8x16xf32>
    %c0_47 = arith.constant 0 : index
    %c0_48 = arith.constant 0 : index
    %c48 = arith.constant 48 : index
    %61 = vector.load %arg4[%c0_47, %c0_48, %c48] : memref<2x8x256xf32, #tpu.memory_space<vmem>>, vector<1x8x16xf32>
    %62 = vector.shape_cast %61 : vector<1x8x16xf32> to vector<8x16xf32>
    %63 = vector.shape_cast %60 : vector<8x16xf32> to vector<1x8x16xf32>
    tpu.vector_store %arg4[%c0_47, %c0_48, %c48], %63 {strides = array<i32>} : memref<2x8x256xf32, #tpu.memory_space<vmem>>, vector<1x8x16xf32>,
    %64 = vector.extract_strided_slice %47 {offsets = [0, 72], sizes = [8, 16], strides = [1, 1]} : vector<8x768xf32> to vector<8x16xf32>
    %c0_49 = arith.constant 0 : index
    %c0_50 = arith.constant 0 : index
    %c64 = arith.constant 64 : index
    %65 = vector.load %arg4[%c0_49, %c0_50, %c64] : memref<2x8x256xf32, #tpu.memory_space<vmem>>, vector<1x8x16xf32>
    %66 = vector.shape_cast %65 : vector<1x8x16xf32> to vector<8x16xf32>
    %67 = vector.shape_cast %64 : vector<8x16xf32> to vector<1x8x16xf32>
    tpu.vector_store %arg4[%c0_49, %c0_50, %c64], %67 {strides = array<i32>} : memref<2x8x256xf32, #tpu.memory_space<vmem>>, vector<1x8x16xf32>,
    %68 = vector.extract_strided_slice %47 {offsets = [0, 90], sizes = [8, 16], strides = [1, 1]} : vector<8x768xf32> to vector<8x16xf32>
    %c0_51 = arith.constant 0 : index
    %c0_52 = arith.constant 0 : index
    %c80 = arith.constant 80 : index
    %69 = vector.load %arg4[%c0_51, %c0_52, %c80] : memref<2x8x256xf32, #tpu.memory_space<vmem>>, vector<1x8x16xf32>
    %70 = vector.shape_cast %69 : vector<1x8x16xf32> to vector<8x16xf32>
    %71 = vector.shape_cast %68 : vector<8x16xf32> to vector<1x8x16xf32>
    tpu.vector_store %arg4[%c0_51, %c0_52, %c80], %71 {strides = array<i32>} : memref<2x8x256xf32, #tpu.memory_space<vmem>>, vector<1x8x16xf32>,
    %72 = vector.extract_strided_slice %47 {offsets = [0, 108], sizes = [8, 16], strides = [1, 1]} : vector<8x768xf32> to vector<8x16xf32>
    %c0_53 = arith.constant 0 : index
    %c0_54 = arith.constant 0 : index
    %c96 = arith.constant 96 : index
    %73 = vector.load %arg4[%c0_53, %c0_54, %c96] : memref<2x8x256xf32, #tpu.memory_space<vmem>>, vector<1x8x16xf32>
    %74 = vector.shape_cast %73 : vector<1x8x16xf32> to vector<8x16xf32>
    %75 = vector.shape_cast %72 : vector<8x16xf32> to vector<1x8x16xf32>
    tpu.vector_store %arg4[%c0_53, %c0_54, %c96], %75 {strides = array<i32>} : memref<2x8x256xf32, #tpu.memory_space<vmem>>, vector<1x8x16xf32>,
    %76 = vector.extract_strided_slice %47 {offsets = [0, 126], sizes = [8, 16], strides = [1, 1]} : vector<8x768xf32> to vector<8x16xf32>
    %c0_55 = arith.constant 0 : index
    %c0_56 = arith.constant 0 : index
    %c112 = arith.constant 112 : index
    %77 = vector.load %arg4[%c0_55, %c0_56, %c112] : memref<2x8x256xf32, #tpu.memory_space<vmem>>, vector<1x8x16xf32>
    %78 = vector.shape_cast %77 : vector<1x8x16xf32> to vector<8x16xf32>
    %79 = vector.shape_cast %76 : vector<8x16xf32> to vector<1x8x16xf32>
    tpu.vector_store %arg4[%c0_55, %c0_56, %c112], %79 {strides = array<i32>} : memref<2x8x256xf32, #tpu.memory_space<vmem>>, vector<1x8x16xf32>,
    %80 = vector.extract_strided_slice %47 {offsets = [0, 144], sizes = [8, 16], strides = [1, 1]} : vector<8x768xf32> to vector<8x16xf32>
    %c0_57 = arith.constant 0 : index
    %c0_58 = arith.constant 0 : index
    %c128 = arith.constant 128 : index
    %81 = vector.load %arg4[%c0_57, %c0_58, %c128] : memref<2x8x256xf32, #tpu.memory_space<vmem>>, vector<1x8x16xf32>
    %82 = vector.shape_cast %81 : vector<1x8x16xf32> to vector<8x16xf32>
    %83 = vector.shape_cast %80 : vector<8x16xf32> to vector<1x8x16xf32>
    tpu.vector_store %arg4[%c0_57, %c0_58, %c128], %83 {strides = array<i32>} : memref<2x8x256xf32, #tpu.memory_space<vmem>>, vector<1x8x16xf32>,
    %84 = vector.extract_strided_slice %47 {offsets = [0, 162], sizes = [8, 16], strides = [1, 1]} : vector<8x768xf32> to vector<8x16xf32>
    %c0_59 = arith.constant 0 : index
    %c0_60 = arith.constant 0 : index
    %c144 = arith.constant 144 : index
    %85 = vector.load %arg4[%c0_59, %c0_60, %c144] : memref<2x8x256xf32, #tpu.memory_space<vmem>>, vector<1x8x16xf32>
    %86 = vector.shape_cast %85 : vector<1x8x16xf32> to vector<8x16xf32>
    %87 = vector.shape_cast %84 : vector<8x16xf32> to vector<1x8x16xf32>
    tpu.vector_store %arg4[%c0_59, %c0_60, %c144], %87 {strides = array<i32>} : memref<2x8x256xf32, #tpu.memory_space<vmem>>, vector<1x8x16xf32>,
    %88 = vector.extract_strided_slice %47 {offsets = [0, 180], sizes = [8, 16], strides = [1, 1]} : vector<8x768xf32> to vector<8x16xf32>
    %c0_61 = arith.constant 0 : index
    %c0_62 = arith.constant 0 : index
    %c160 = arith.constant 160 : index
    %89 = vector.load %arg4[%c0_61, %c0_62, %c160] : memref<2x8x256xf32, #tpu.memory_space<vmem>>, vector<1x8x16xf32>
    %90 = vector.shape_cast %89 : vector<1x8x16xf32> to vector<8x16xf32>
    %91 = vector.shape_cast %88 : vector<8x16xf32> to vector<1x8x16xf32>
    tpu.vector_store %arg4[%c0_61, %c0_62, %c160], %91 {strides = array<i32>} : memref<2x8x256xf32, #tpu.memory_space<vmem>>, vector<1x8x16xf32>,
    %92 = vector.extract_strided_slice %47 {offsets = [0, 198], sizes = [8, 16], strides = [1, 1]} : vector<8x768xf32> to vector<8x16xf32>
    %c0_63 = arith.constant 0 : index
    %c0_64 = arith.constant 0 : index
    %c176 = arith.constant 176 : index
    %93 = vector.load %arg4[%c0_63, %c0_64, %c176] : memref<2x8x256xf32, #tpu.memory_space<vmem>>, vector<1x8x16xf32>
    %94 = vector.shape_cast %93 : vector<1x8x16xf32> to vector<8x16xf32>
    %95 = vector.shape_cast %92 : vector<8x16xf32> to vector<1x8x16xf32>
    tpu.vector_store %arg4[%c0_63, %c0_64, %c176], %95 {strides = array<i32>} : memref<2x8x256xf32, #tpu.memory_space<vmem>>, vector<1x8x16xf32>,
    %96 = vector.extract_strided_slice %47 {offsets = [0, 216], sizes = [8, 16], strides = [1, 1]} : vector<8x768xf32> to vector<8x16xf32>
    %c0_65 = arith.constant 0 : index
    %c0_66 = arith.constant 0 : index
    %c192 = arith.constant 192 : index
    %97 = vector.load %arg4[%c0_65, %c0_66, %c192] : memref<2x8x256xf32, #tpu.memory_space<vmem>>, vector<1x8x16xf32>
    %98 = vector.shape_cast %97 : vector<1x8x16xf32> to vector<8x16xf32>
    %99 = vector.shape_cast %96 : vector<8x16xf32> to vector<1x8x16xf32>
    tpu.vector_store %arg4[%c0_65, %c0_66, %c192], %99 {strides = array<i32>} : memref<2x8x256xf32, #tpu.memory_space<vmem>>, vector<1x8x16xf32>,
    %100 = vector.extract_strided_slice %47 {offsets = [0, 234], sizes = [8, 16], strides = [1, 1]} : vector<8x768xf32> to vector<8x16xf32>
    %c0_67 = arith.constant 0 : index
    %c0_68 = arith.constant 0 : index
    %c208 = arith.constant 208 : index
    %101 = vector.load %arg4[%c0_67, %c0_68, %c208] : memref<2x8x256xf32, #tpu.memory_space<vmem>>, vector<1x8x16xf32>
    %102 = vector.shape_cast %101 : vector<1x8x16xf32> to vector<8x16xf32>
    %103 = vector.shape_cast %100 : vector<8x16xf32> to vector<1x8x16xf32>
    tpu.vector_store %arg4[%c0_67, %c0_68, %c208], %103 {strides = array<i32>} : memref<2x8x256xf32, #tpu.memory_space<vmem>>, vector<1x8x16xf32>,
    %104 = vector.extract_strided_slice %47 {offsets = [0, 252], sizes = [8, 16], strides = [1, 1]} : vector<8x768xf32> to vector<8x16xf32>
    %c0_69 = arith.constant 0 : index
    %c0_70 = arith.constant 0 : index
    %c224 = arith.constant 224 : index
    %105 = vector.load %arg4[%c0_69, %c0_70, %c224] : memref<2x8x256xf32, #tpu.memory_space<vmem>>, vector<1x8x16xf32>
    %106 = vector.shape_cast %105 : vector<1x8x16xf32> to vector<8x16xf32>
    %107 = vector.shape_cast %104 : vector<8x16xf32> to vector<1x8x16xf32>
    tpu.vector_store %arg4[%c0_69, %c0_70, %c224], %107 {strides = array<i32>} : memref<2x8x256xf32, #tpu.memory_space<vmem>>, vector<1x8x16xf32>,
    %108 = vector.extract_strided_slice %47 {offsets = [0, 270], sizes = [8, 16], strides = [1, 1]} : vector<8x768xf32> to vector<8x16xf32>
    %c0_71 = arith.constant 0 : index
    %c0_72 = arith.constant 0 : index
    %c240 = arith.constant 240 : index
    %109 = vector.load %arg4[%c0_71, %c0_72, %c240] : memref<2x8x256xf32, #tpu.memory_space<vmem>>, vector<1x8x16xf32>
    %110 = vector.shape_cast %109 : vector<1x8x16xf32> to vector<8x16xf32>
    %111 = vector.shape_cast %108 : vector<8x16xf32> to vector<1x8x16xf32>
    tpu.vector_store %arg4[%c0_71, %c0_72, %c240], %111 {strides = array<i32>} : memref<2x8x256xf32, #tpu.memory_space<vmem>>, vector<1x8x16xf32>,
    %112 = vector.extract_strided_slice %47 {offsets = [0, 384], sizes = [8, 16], strides = [1, 1]} : vector<8x768xf32> to vector<8x16xf32>
    %c1_73 = arith.constant 1 : index
    %c0_74 = arith.constant 0 : index
    %c0_75 = arith.constant 0 : index
    %113 = vector.load %arg4[%c1_73, %c0_74, %c0_75] : memref<2x8x256xf32, #tpu.memory_space<vmem>>, vector<1x8x16xf32>
    %114 = vector.shape_cast %113 : vector<1x8x16xf32> to vector<8x16xf32>
    %115 = vector.shape_cast %112 : vector<8x16xf32> to vector<1x8x16xf32>
    tpu.vector_store %arg4[%c1_73, %c0_74, %c0_75], %115 {strides = array<i32>} : memref<2x8x256xf32, #tpu.memory_space<vmem>>, vector<1x8x16xf32>,
    %116 = vector.extract_strided_slice %47 {offsets = [0, 402], sizes = [8, 16], strides = [1, 1]} : vector<8x768xf32> to vector<8x16xf32>
    %c1_76 = arith.constant 1 : index
    %c0_77 = arith.constant 0 : index
    %c16_78 = arith.constant 16 : index
    %117 = vector.load %arg4[%c1_76, %c0_77, %c16_78] : memref<2x8x256xf32, #tpu.memory_space<vmem>>, vector<1x8x16xf32>
    %118 = vector.shape_cast %117 : vector<1x8x16xf32> to vector<8x16xf32>
    %119 = vector.shape_cast %116 : vector<8x16xf32> to vector<1x8x16xf32>
    tpu.vector_store %arg4[%c1_76, %c0_77, %c16_78], %119 {strides = array<i32>} : memref<2x8x256xf32, #tpu.memory_space<vmem>>, vector<1x8x16xf32>,
    %120 = vector.extract_strided_slice %47 {offsets = [0, 420], sizes = [8, 16], strides = [1, 1]} : vector<8x768xf32> to vector<8x16xf32>
    %c1_79 = arith.constant 1 : index
    %c0_80 = arith.constant 0 : index
    %c32_81 = arith.constant 32 : index
    %121 = vector.load %arg4[%c1_79, %c0_80, %c32_81] : memref<2x8x256xf32, #tpu.memory_space<vmem>>, vector<1x8x16xf32>
    %122 = vector.shape_cast %121 : vector<1x8x16xf32> to vector<8x16xf32>
    %123 = vector.shape_cast %120 : vector<8x16xf32> to vector<1x8x16xf32>
    tpu.vector_store %arg4[%c1_79, %c0_80, %c32_81], %123 {strides = array<i32>} : memref<2x8x256xf32, #tpu.memory_space<vmem>>, vector<1x8x16xf32>,
    %124 = vector.extract_strided_slice %47 {offsets = [0, 438], sizes = [8, 16], strides = [1, 1]} : vector<8x768xf32> to vector<8x16xf32>
    %c1_82 = arith.constant 1 : index
    %c0_83 = arith.constant 0 : index
    %c48_84 = arith.constant 48 : index
    %125 = vector.load %arg4[%c1_82, %c0_83, %c48_84] : memref<2x8x256xf32, #tpu.memory_space<vmem>>, vector<1x8x16xf32>
    %126 = vector.shape_cast %125 : vector<1x8x16xf32> to vector<8x16xf32>
    %127 = vector.shape_cast %124 : vector<8x16xf32> to vector<1x8x16xf32>
    tpu.vector_store %arg4[%c1_82, %c0_83, %c48_84], %127 {strides = array<i32>} : memref<2x8x256xf32, #tpu.memory_space<vmem>>, vector<1x8x16xf32>,
    %128 = vector.extract_strided_slice %47 {offsets = [0, 456], sizes = [8, 16], strides = [1, 1]} : vector<8x768xf32> to vector<8x16xf32>
    %c1_85 = arith.constant 1 : index
    %c0_86 = arith.constant 0 : index
    %c64_87 = arith.constant 64 : index
    %129 = vector.load %arg4[%c1_85, %c0_86, %c64_87] : memref<2x8x256xf32, #tpu.memory_space<vmem>>, vector<1x8x16xf32>
    %130 = vector.shape_cast %129 : vector<1x8x16xf32> to vector<8x16xf32>
    %131 = vector.shape_cast %128 : vector<8x16xf32> to vector<1x8x16xf32>
    tpu.vector_store %arg4[%c1_85, %c0_86, %c64_87], %131 {strides = array<i32>} : memref<2x8x256xf32, #tpu.memory_space<vmem>>, vector<1x8x16xf32>,
    %132 = vector.extract_strided_slice %47 {offsets = [0, 474], sizes = [8, 16], strides = [1, 1]} : vector<8x768xf32> to vector<8x16xf32>
    %c1_88 = arith.constant 1 : index
    %c0_89 = arith.constant 0 : index
    %c80_90 = arith.constant 80 : index
    %133 = vector.load %arg4[%c1_88, %c0_89, %c80_90] : memref<2x8x256xf32, #tpu.memory_space<vmem>>, vector<1x8x16xf32>
    %134 = vector.shape_cast %133 : vector<1x8x16xf32> to vector<8x16xf32>
    %135 = vector.shape_cast %132 : vector<8x16xf32> to vector<1x8x16xf32>
    tpu.vector_store %arg4[%c1_88, %c0_89, %c80_90], %135 {strides = array<i32>} : memref<2x8x256xf32, #tpu.memory_space<vmem>>, vector<1x8x16xf32>,
    %136 = vector.extract_strided_slice %47 {offsets = [0, 492], sizes = [8, 16], strides = [1, 1]} : vector<8x768xf32> to vector<8x16xf32>
    %c1_91 = arith.constant 1 : index
    %c0_92 = arith.constant 0 : index
    %c96_93 = arith.constant 96 : index
    %137 = vector.load %arg4[%c1_91, %c0_92, %c96_93] : memref<2x8x256xf32, #tpu.memory_space<vmem>>, vector<1x8x16xf32>
    %138 = vector.shape_cast %137 : vector<1x8x16xf32> to vector<8x16xf32>
    %139 = vector.shape_cast %136 : vector<8x16xf32> to vector<1x8x16xf32>
    tpu.vector_store %arg4[%c1_91, %c0_92, %c96_93], %139 {strides = array<i32>} : memref<2x8x256xf32, #tpu.memory_space<vmem>>, vector<1x8x16xf32>,
    %140 = vector.extract_strided_slice %47 {offsets = [0, 510], sizes = [8, 16], strides = [1, 1]} : vector<8x768xf32> to vector<8x16xf32>
    %c1_94 = arith.constant 1 : index
    %c0_95 = arith.constant 0 : index
    %c112_96 = arith.constant 112 : index
    %141 = vector.load %arg4[%c1_94, %c0_95, %c112_96] : memref<2x8x256xf32, #tpu.memory_space<vmem>>, vector<1x8x16xf32>
    %142 = vector.shape_cast %141 : vector<1x8x16xf32> to vector<8x16xf32>
    %143 = vector.shape_cast %140 : vector<8x16xf32> to vector<1x8x16xf32>
    tpu.vector_store %arg4[%c1_94, %c0_95, %c112_96], %143 {strides = array<i32>} : memref<2x8x256xf32, #tpu.memory_space<vmem>>, vector<1x8x16xf32>,
    %144 = vector.extract_strided_slice %47 {offsets = [0, 528], sizes = [8, 16], strides = [1, 1]} : vector<8x768xf32> to vector<8x16xf32>
    %c1_97 = arith.constant 1 : index
    %c0_98 = arith.constant 0 : index
    %c128_99 = arith.constant 128 : index
    %145 = vector.load %arg4[%c1_97, %c0_98, %c128_99] : memref<2x8x256xf32, #tpu.memory_space<vmem>>, vector<1x8x16xf32>
    %146 = vector.shape_cast %145 : vector<1x8x16xf32> to vector<8x16xf32>
    %147 = vector.shape_cast %144 : vector<8x16xf32> to vector<1x8x16xf32>
    tpu.vector_store %arg4[%c1_97, %c0_98, %c128_99], %147 {strides = array<i32>} : memref<2x8x256xf32, #tpu.memory_space<vmem>>, vector<1x8x16xf32>,
    %148 = vector.extract_strided_slice %47 {offsets = [0, 546], sizes = [8, 16], strides = [1, 1]} : vector<8x768xf32> to vector<8x16xf32>
    %c1_100 = arith.constant 1 : index
    %c0_101 = arith.constant 0 : index
    %c144_102 = arith.constant 144 : index
    %149 = vector.load %arg4[%c1_100, %c0_101, %c144_102] : memref<2x8x256xf32, #tpu.memory_space<vmem>>, vector<1x8x16xf32>
    %150 = vector.shape_cast %149 : vector<1x8x16xf32> to vector<8x16xf32>
    %151 = vector.shape_cast %148 : vector<8x16xf32> to vector<1x8x16xf32>
    tpu.vector_store %arg4[%c1_100, %c0_101, %c144_102], %151 {strides = array<i32>} : memref<2x8x256xf32, #tpu.memory_space<vmem>>, vector<1x8x16xf32>,
    %152 = vector.extract_strided_slice %47 {offsets = [0, 564], sizes = [8, 16], strides = [1, 1]} : vector<8x768xf32> to vector<8x16xf32>
    %c1_103 = arith.constant 1 : index
    %c0_104 = arith.constant 0 : index
    %c160_105 = arith.constant 160 : index
    %153 = vector.load %arg4[%c1_103, %c0_104, %c160_105] : memref<2x8x256xf32, #tpu.memory_space<vmem>>, vector<1x8x16xf32>
    %154 = vector.shape_cast %153 : vector<1x8x16xf32> to vector<8x16xf32>
    %155 = vector.shape_cast %152 : vector<8x16xf32> to vector<1x8x16xf32>
    tpu.vector_store %arg4[%c1_103, %c0_104, %c160_105], %155 {strides = array<i32>} : memref<2x8x256xf32, #tpu.memory_space<vmem>>, vector<1x8x16xf32>,
    %156 = vector.extract_strided_slice %47 {offsets = [0, 582], sizes = [8, 16], strides = [1, 1]} : vector<8x768xf32> to vector<8x16xf32>
    %c1_106 = arith.constant 1 : index
    %c0_107 = arith.constant 0 : index
    %c176_108 = arith.constant 176 : index
    %157 = vector.load %arg4[%c1_106, %c0_107, %c176_108] : memref<2x8x256xf32, #tpu.memory_space<vmem>>, vector<1x8x16xf32>
    %158 = vector.shape_cast %157 : vector<1x8x16xf32> to vector<8x16xf32>
    %159 = vector.shape_cast %156 : vector<8x16xf32> to vector<1x8x16xf32>
    tpu.vector_store %arg4[%c1_106, %c0_107, %c176_108], %159 {strides = array<i32>} : memref<2x8x256xf32, #tpu.memory_space<vmem>>, vector<1x8x16xf32>,
    %160 = vector.extract_strided_slice %47 {offsets = [0, 600], sizes = [8, 16], strides = [1, 1]} : vector<8x768xf32> to vector<8x16xf32>
    %c1_109 = arith.constant 1 : index
    %c0_110 = arith.constant 0 : index
    %c192_111 = arith.constant 192 : index
    %161 = vector.load %arg4[%c1_109, %c0_110, %c192_111] : memref<2x8x256xf32, #tpu.memory_space<vmem>>, vector<1x8x16xf32>
    %162 = vector.shape_cast %161 : vector<1x8x16xf32> to vector<8x16xf32>
    %163 = vector.shape_cast %160 : vector<8x16xf32> to vector<1x8x16xf32>
    tpu.vector_store %arg4[%c1_109, %c0_110, %c192_111], %163 {strides = array<i32>} : memref<2x8x256xf32, #tpu.memory_space<vmem>>, vector<1x8x16xf32>,
    %164 = vector.extract_strided_slice %47 {offsets = [0, 618], sizes = [8, 16], strides = [1, 1]} : vector<8x768xf32> to vector<8x16xf32>
    %c1_112 = arith.constant 1 : index
    %c0_113 = arith.constant 0 : index
    %c208_114 = arith.constant 208 : index
    %165 = vector.load %arg4[%c1_112, %c0_113, %c208_114] : memref<2x8x256xf32, #tpu.memory_space<vmem>>, vector<1x8x16xf32>
    %166 = vector.shape_cast %165 : vector<1x8x16xf32> to vector<8x16xf32>
    %167 = vector.shape_cast %164 : vector<8x16xf32> to vector<1x8x16xf32>
    tpu.vector_store %arg4[%c1_112, %c0_113, %c208_114], %167 {strides = array<i32>} : memref<2x8x256xf32, #tpu.memory_space<vmem>>, vector<1x8x16xf32>,
    %168 = vector.extract_strided_slice %47 {offsets = [0, 636], sizes = [8, 16], strides = [1, 1]} : vector<8x768xf32> to vector<8x16xf32>
    %c1_115 = arith.constant 1 : index
    %c0_116 = arith.constant 0 : index
    %c224_117 = arith.constant 224 : index
    %169 = vector.load %arg4[%c1_115, %c0_116, %c224_117] : memref<2x8x256xf32, #tpu.memory_space<vmem>>, vector<1x8x16xf32>
    %170 = vector.shape_cast %169 : vector<1x8x16xf32> to vector<8x16xf32>
    %171 = vector.shape_cast %168 : vector<8x16xf32> to vector<1x8x16xf32>
    tpu.vector_store %arg4[%c1_115, %c0_116, %c224_117], %171 {strides = array<i32>} : memref<2x8x256xf32, #tpu.memory_space<vmem>>, vector<1x8x16xf32>,
    %172 = vector.extract_strided_slice %47 {offsets = [0, 654], sizes = [8, 16], strides = [1, 1]} : vector<8x768xf32> to vector<8x16xf32>
    %c1_118 = arith.constant 1 : index
    %c0_119 = arith.constant 0 : index
    %c240_120 = arith.constant 240 : index
    %173 = vector.load %arg4[%c1_118, %c0_119, %c240_120] : memref<2x8x256xf32, #tpu.memory_space<vmem>>, vector<1x8x16xf32>
    %174 = vector.shape_cast %173 : vector<1x8x16xf32> to vector<8x16xf32>
    %175 = vector.shape_cast %172 : vector<8x16xf32> to vector<1x8x16xf32>
    tpu.vector_store %arg4[%c1_118, %c0_119, %c240_120], %175 {strides = array<i32>} : memref<2x8x256xf32, #tpu.memory_space<vmem>>, vector<1x8x16xf32>,
    return
  }
  func.func @transform_0(%arg0: i32) -> (i32, i32, i32) {
    %c0_i32 = arith.constant 0 : i32
    %c0_i32_0 = arith.constant 0 : i32
    %c0_i32_1 = arith.constant 0 : i32
    %c0_i32_2 = arith.constant 0 : i32
    return %c0_i32, %c0_i32_0, %c0_i32_1 : i32, i32, i32
  }
  func.func @transform_1(%arg0: i32) -> (i32, i32) {
    %c0_i32 = arith.constant 0 : i32
    %c0_i32_0 = arith.constant 0 : i32
    %c0_i32_1 = arith.constant 0 : i32
    return %c0_i32, %c0_i32_0 : i32, i32
  }
  func.func @transform_2(%arg0: i32) -> (i32, i32) {
    %c0_i32 = arith.constant 0 : i32
    %c0_i32_0 = arith.constant 0 : i32
    %c0_i32_1 = arith.constant 0 : i32
    return %c0_i32, %c0_i32_0 : i32, i32
  }
  func.func @transform_3(%arg0: i32) -> (i32, i32, i32) {
    %c0_i32 = arith.constant 0 : i32
    %c0_i32_0 = arith.constant 0 : i32
    %c0_i32_1 = arith.constant 0 : i32
    %c0_i32_2 = arith.constant 0 : i32
    return %c0_i32, %c0_i32_0, %c0_i32_1 : i32, i32, i32
  }
}

</mosaic_0001>

<llo_original>
// kernel: conv_relu.1
$region0: #{conv_relu.1}
  #allocation0 [shape = 'u32[]', space=smem, size = 0x4, offset = 0x4, fixed_abs, tag = 'smem constant byte address 0x4 - core index']
  #allocation1 [shape = 'u32[144,128]{1,0:T(1,128)}', space=vmem, size = 0x12000, scoped, tag = 'internal scratch']
  #allocation2 [shape = 'bf16[36,768]{1,0:T(8,128)(2,1)}', space=vmem, size = 0xf000, scoped, tag = 'scratch operand']
  %s0 = inlined_call_operand.vmem [shape: bf16[2,4,432], index: 0, kind: input, shape index: {}]
  %s1 = inlined_call_operand.vmem [shape: bf16[8,36], index: 1, kind: input, shape index: {}]
  %s2 = inlined_call_operand.vmem [shape: f32[8,1], index: 2, kind: input, shape index: {}]
  %s3 = inlined_call_operand.vmem [shape: f32[2,8,256], index: 3, kind: output, shape index: {}]
  %s4 = sld [smem:[#allocation0]]
  $region22: #{conv_relu.1} parent=0
    _
  %s6 = ssub.s32 1, %s4
  %s7 = scalar_select 0, %s6, %s4
  // Predicated region
  $region2: #{conv_relu.1} parent=0 // pred_check
    _
  $region3: #{conv_relu.1} parent=0 // pred_check_branch
    %9 = sbr.rel (0) target = $region5
  $region4: #{conv_relu.1} parent=0 // pred_region
    _
  $region5: #{conv_relu.1} parent=0 // pred_fallthru
    _
  // Predicated region
  $region6: #{conv_relu.1} parent=0 // pred_check
    _
  $region7: #{conv_relu.1} parent=0 // pred_check_branch
    %11 = sbr.rel (0) target = $region9
  $region8: #{conv_relu.1} parent=0 // pred_region
    _
  $region9: #{conv_relu.1} parent=0 // pred_fallthru
    _
  // Predicated region
  $region10: #{conv_relu.1} parent=0 // pred_check
    _
  $region11: #{conv_relu.1} parent=0 // pred_check_branch
    %13 = sbr.rel (0) target = $region13
  $region12: #{conv_relu.1} parent=0 // pred_region
    _
  $region13: #{conv_relu.1} parent=0 // pred_fallthru
    _
  %v15 = vld [vmem:[%s0] sm:$0xff]
  %v17 = vcombine.high %v15, %v15
  %v19 = vunpack.c.l.s4 1983009808
  %v20 = vunpack.c.0.s8 %v19
  %v21 = vlaneseq
  %v22 = vshrl.u32 %v21, 7
  %v23 = vsub.s32 %v20, %v22
  %v24 = vrot.slane %v15, %v23
  %v26 = vunpack.c.l.s4 1983009808
  %v27 = vunpack.c.0.s8 %v26
  %v28 = vlaneseq
  %v29 = vshrl.u32 %v28, 7
  %v30 = vsub.s32 %v27, %v29
  %v31 = vrot.slane %v17, %v30
  %34 = vst [vmem:[#allocation2] sm:$0x33] %v24
  %35 = vst [vmem:[#allocation2 + $0x8] sm:$0x3] %v31
  %v36 = vcombine.low %v15, %v15
  %v38 = vunpack.c.l.s4 1983009808
  %v39 = vunpack.c.0.s8 %v38
  %v40 = vlaneseq
  %v41 = vshrl.u32 %v40, 7
  %v42 = vsub.s32 %v39, %v41
  %v43 = vrot.slane %v36, %v42
  %44 = vrot.lane.b32.xlu0 %v43, 127
  %v45 = vpop.permute.xlu0 %44
  %46 = vrot.lane.b32.xlu0 %v24, 127
  %v47 = vpop.permute.xlu0 %46
  %v48 = vrot.slane %v45, 4
  %v49 = vrot.slane %v47, 4
  %vm50 = vcmask 1043456
  %v51 = vsel %vm50, %v48, %v49
  %vm52 = vcmask 1039360
  %v53 = vsel %vm52, %v45, %v51
  %v54 = vsel %vm52, %v47, %v49
  %57 = vst [vmem:[#allocation2] sm:$0xcc] %v53
  %58 = vst [vmem:[#allocation2 + $0x8] sm:$0xc] %v54
  %59 = vrot.lane.b32.xlu0 %v24, 126
  %v60 = vpop.permute.xlu0 %59
  %61 = vrot.lane.b32.xlu0 %v31, 126
  %v62 = vpop.permute.xlu0 %61
  %v63 = vrot.slane %v60, 4
  %v64 = vrot.slane %v62, 4
  %v65 = vsel %vm50, %v63, %v64
  %vm66 = vcmask 1031168
  %v67 = vsel %vm66, %v60, %v65
  %v68 = vsel %vm66, %v62, %v64
  %71 = vst [vmem:[#allocation2 + $0x18] sm:$0x33] %v67
  %72 = vst [vmem:[#allocation2 + $0x20] sm:$0x3] %v68
  %73 = vrot.lane.b32.xlu0 %v43, 110
  %v74 = vpop.permute.xlu0 %73
  %75 = vrot.lane.b32.xlu0 %v24, 110
  %v76 = vpop.permute.xlu0 %75
  %v77 = vrot.slane %v74, 4
  %v78 = vrot.slane %v76, 4
  %v79 = vsel %vm50, %v77, %v78
  %vm80 = vcmask 900096
  %v81 = vsel %vm80, %v74, %v79
  %v82 = vsel %vm80, %v76, %v78
  %85 = vst [vmem:[#allocation2 + $0x18] sm:$0xcc] %v81
  %86 = vst [vmem:[#allocation2 + $0x20] sm:$0xc] %v82
  %87 = vrot.lane.b32.xlu0 %v24, 109
  %v88 = vpop.permute.xlu0 %87
  %89 = vrot.lane.b32.xlu0 %v31, 109
  %v90 = vpop.permute.xlu0 %89
  %v91 = vrot.slane %v88, 4
  %v92 = vrot.slane %v90, 4
  %v93 = vsel %vm50, %v91, %v92
  %vm94 = vcmask 891904
  %v95 = vsel %vm94, %v88, %v93
  %v96 = vsel %vm94, %v90, %v92
  %99 = vst [vmem:[#allocation2 + $0x30] sm:$0x33] %v95
  %100 = vst [vmem:[#allocation2 + $0x38] sm:$0x3] %v96
  %101 = vrot.lane.b32.xlu0 %v43, 108
  %v102 = vpop.permute.xlu0 %101
  %103 = vrot.lane.b32.xlu0 %v24, 108
  %v104 = vpop.permute.xlu0 %103
  %v105 = vrot.slane %v102, 4
  %v106 = vrot.slane %v104, 4
  %v107 = vsel %vm50, %v105, %v106
  %vm108 = vcmask 883712
  %v109 = vsel %vm108, %v102, %v107
  %v110 = vsel %vm108, %v104, %v106
  %113 = vst [vmem:[#allocation2 + $0x30] sm:$0xcc] %v109
  %114 = vst [vmem:[#allocation2 + $0x38] sm:$0xc] %v110
  %115 = vrot.lane.b32.xlu0 %v24, 92
  %v116 = vpop.permute.xlu0 %115
  %117 = vrot.lane.b32.xlu0 %v31, 92
  %v118 = vpop.permute.xlu0 %117
  %v119 = vrot.slane %v116, 4
  %v120 = vrot.slane %v118, 4
  %v121 = vsel %vm50, %v119, %v120
  %vm122 = vcmask 752640
  %v123 = vsel %vm122, %v116, %v121
  %v124 = vsel %vm122, %v118, %v120
  %127 = vst [vmem:[#allocation2 + $0x48] sm:$0x33] %v123
  %128 = vst [vmem:[#allocation2 + $0x50] sm:$0x3] %v124
  %129 = vrot.lane.b32.xlu0 %v43, 91
  %v130 = vpop.permute.xlu0 %129
  %131 = vrot.lane.b32.xlu0 %v24, 91
  %v132 = vpop.permute.xlu0 %131
  %v133 = vrot.slane %v130, 4
  %v134 = vrot.slane %v132, 4
  %v135 = vsel %vm50, %v133, %v134
  %vm136 = vcmask 744448
  %v137 = vsel %vm136, %v130, %v135
  %v138 = vsel %vm136, %v132, %v134
  %141 = vst [vmem:[#allocation2 + $0x48] sm:$0xcc] %v137
  %142 = vst [vmem:[#allocation2 + $0x50] sm:$0xc] %v138
  %143 = vrot.lane.b32.xlu0 %v24, 90
  %v144 = vpop.permute.xlu0 %143
  %145 = vrot.lane.b32.xlu0 %v31, 90
  %v146 = vpop.permute.xlu0 %145
  %v147 = vrot.slane %v144, 4
  %v148 = vrot.slane %v146, 4
  %v149 = vsel %vm50, %v147, %v148
  %vm150 = vcmask 736256
  %v151 = vsel %vm150, %v144, %v149
  %v152 = vsel %vm150, %v146, %v148
  %155 = vst [vmem:[#allocation2 + $0x60] sm:$0x33] %v151
  %156 = vst [vmem:[#allocation2 + $0x68] sm:$0x3] %v152
  %s157 = scalar_lea.vmem %s0, 8
  %v158 = vld [vmem:[%s157] sm:$0xff]
  %v160 = vcombine.high %v158, %v158
  %v162 = vunpack.c.l.s4 1983009808
  %v163 = vunpack.c.0.s8 %v162
  %v164 = vlaneseq
  %v165 = vshrl.u32 %v164, 7
  %v166 = vsub.s32 %v163, %v165
  %v167 = vrot.slane %v158, %v166
  %v169 = vunpack.c.l.s4 1983009808
  %v170 = vunpack.c.0.s8 %v169
  %v171 = vlaneseq
  %v172 = vshrl.u32 %v171, 7
  %v173 = vsub.s32 %v170, %v172
  %v174 = vrot.slane %v160, %v173
  %177 = vst [vmem:[#allocation2 + $0xc] sm:$0x33] %v167
  %178 = vst [vmem:[#allocation2 + $0x14] sm:$0x3] %v174
  %v179 = vcombine.low %v158, %v158
  %v181 = vunpack.c.l.s4 1983009808
  %v182 = vunpack.c.0.s8 %v181
  %v183 = vlaneseq
  %v184 = vshrl.u32 %v183, 7
  %v185 = vsub.s32 %v182, %v184
  %v186 = vrot.slane %v179, %v185
  %187 = vrot.lane.b32.xlu0 %v186, 127
  %v188 = vpop.permute.xlu0 %187
  %189 = vrot.lane.b32.xlu0 %v167, 127
  %v190 = vpop.permute.xlu0 %189
  %v191 = vrot.slane %v188, 4
  %v192 = vrot.slane %v190, 4
  %v193 = vsel %vm50, %v191, %v192
  %v194 = vsel %vm52, %v188, %v193
  %v195 = vsel %vm52, %v190, %v192
  %198 = vst [vmem:[#allocation2 + $0xc] sm:$0xcc] %v194
  %199 = vst [vmem:[#allocation2 + $0x14] sm:$0xc] %v195
  %200 = vrot.lane.b32.xlu0 %v167, 126
  %v201 = vpop.permute.xlu0 %200
  %202 = vrot.lane.b32.xlu0 %v174, 126
  %v203 = vpop.permute.xlu0 %202
  %v204 = vrot.slane %v201, 4
  %v205 = vrot.slane %v203, 4
  %v206 = vsel %vm50, %v204, %v205
  %v207 = vsel %vm66, %v201, %v206
  %v208 = vsel %vm66, %v203, %v205
  %211 = vst [vmem:[#allocation2 + $0x24] sm:$0x33] %v207
  %212 = vst [vmem:[#allocation2 + $0x2c] sm:$0x3] %v208
  %213 = vrot.lane.b32.xlu0 %v186, 110
  %v214 = vpop.permute.xlu0 %213
  %215 = vrot.lane.b32.xlu0 %v167, 110
  %v216 = vpop.permute.xlu0 %215
  %v217 = vrot.slane %v214, 4
  %v218 = vrot.slane %v216, 4
  %v219 = vsel %vm50, %v217, %v218
  %v220 = vsel %vm80, %v214, %v219
  %v221 = vsel %vm80, %v216, %v218
  %224 = vst [vmem:[#allocation2 + $0x24] sm:$0xcc] %v220
  %225 = vst [vmem:[#allocation2 + $0x2c] sm:$0xc] %v221
  %226 = vrot.lane.b32.xlu0 %v167, 109
  %v227 = vpop.permute.xlu0 %226
  %228 = vrot.lane.b32.xlu0 %v174, 109
  %v229 = vpop.permute.xlu0 %228
  %v230 = vrot.slane %v227, 4
  %v231 = vrot.slane %v229, 4
  %v232 = vsel %vm50, %v230, %v231
  %v233 = vsel %vm94, %v227, %v232
  %v234 = vsel %vm94, %v229, %v231
  %237 = vst [vmem:[#allocation2 + $0x3c] sm:$0x33] %v233
  %238 = vst [vmem:[#allocation2 + $0x44] sm:$0x3] %v234
  %239 = vrot.lane.b32.xlu0 %v186, 108
  %v240 = vpop.permute.xlu0 %239
  %241 = vrot.lane.b32.xlu0 %v167, 108
  %v242 = vpop.permute.xlu0 %241
  %v243 = vrot.slane %v240, 4
  %v244 = vrot.slane %v242, 4
  %v245 = vsel %vm50, %v243, %v244
  %v246 = vsel %vm108, %v240, %v245
  %v247 = vsel %vm108, %v242, %v244
  %250 = vst [vmem:[#allocation2 + $0x3c] sm:$0xcc] %v246
  %251 = vst [vmem:[#allocation2 + $0x44] sm:$0xc] %v247
  %252 = vrot.lane.b32.xlu0 %v167, 92
  %v253 = vpop.permute.xlu0 %252
  %254 = vrot.lane.b32.xlu0 %v174, 92
  %v255 = vpop.permute.xlu0 %254
  %v256 = vrot.slane %v253, 4
  %v257 = vrot.slane %v255, 4
  %v258 = vsel %vm50, %v256, %v257
  %v259 = vsel %vm122, %v253, %v258
  %v260 = vsel %vm122, %v255, %v257
  %263 = vst [vmem:[#allocation2 + $0x54] sm:$0x33] %v259
  %264 = vst [vmem:[#allocation2 + $0x5c] sm:$0x3] %v260
  %265 = vrot.lane.b32.xlu0 %v186, 91
  %v266 = vpop.permute.xlu0 %265
  %267 = vrot.lane.b32.xlu0 %v167, 91
  %v268 = vpop.permute.xlu0 %267
  %v269 = vrot.slane %v266, 4
  %v270 = vrot.slane %v268, 4
  %v271 = vsel %vm50, %v269, %v270
  %v272 = vsel %vm136, %v266, %v271
  %v273 = vsel %vm136, %v268, %v270
  %276 = vst [vmem:[#allocation2 + $0x54] sm:$0xcc] %v272
  %277 = vst [vmem:[#allocation2 + $0x5c] sm:$0xc] %v273
  %278 = vrot.lane.b32.xlu0 %v167, 90
  %v279 = vpop.permute.xlu0 %278
  %280 = vrot.lane.b32.xlu0 %v174, 90
  %v281 = vpop.permute.xlu0 %280
  %v282 = vrot.slane %v279, 4
  %v283 = vrot.slane %v281, 4
  %v284 = vsel %vm50, %v282, %v283
  %v285 = vsel %vm150, %v279, %v284
  %v286 = vsel %vm150, %v281, %v283
  %289 = vst [vmem:[#allocation2 + $0x6c] sm:$0x33] %v285
  %290 = vst [vmem:[#allocation2 + $0x74] sm:$0x3] %v286
  %v291 = vld [vmem:[%s1] sm:$0xf]
  %v292 = vld [vmem:[#allocation2] sm:$0xff]
  %v293 = vld [vmem:[#allocation2 + $0x8] sm:$0xff]
  %v294 = vld [vmem:[#allocation2 + $0x10] sm:$0xff]
  %v295 = vld [vmem:[#allocation2 + $0x18] sm:$0xff]
  %v296 = vld [vmem:[#allocation2 + $0x20] sm:$0xff]
  %v297 = vld [vmem:[#allocation2 + $0x28] sm:$0xff]
  %v298 = vld [vmem:[#allocation2 + $0x30] sm:$0xff]
  %v299 = vld [vmem:[#allocation2 + $0x38] sm:$0xff]
  %v300 = vld [vmem:[#allocation2 + $0x40] sm:$0xff]
  %v301 = vld [vmem:[#allocation2 + $0x48] sm:$0xff]
  %v302 = vld [vmem:[#allocation2 + $0x50] sm:$0xff]
  %v303 = vld [vmem:[#allocation2 + $0x58] sm:$0xff]
  %v304 = vld [vmem:[#allocation2 + $0x60] sm:$0x33]
  %v305 = vld [vmem:[#allocation2 + $0x68] sm:$0x33]
  %v306 = vld [vmem:[#allocation2 + $0x70] sm:$0x33]
  %v307 = vld [vmem:[%s2] sm:$0xff]
  %309 = vset.pattern.permute.xlu0 0
  %310 = vperm.xlu0 %309, %v307
  %v311 = vpop.permute.xlu0 %310
  %v328 = vunpack.c.l.b16 %v292
  %v329 = vunpack.c.h.b16 %v292
  %v330 = vunpack.c.l.b16 %v293
  %v331 = vunpack.c.h.b16 %v293
  %v332 = vunpack.c.l.b16 %v294
  %v333 = vunpack.c.h.b16 %v294
  %v334 = vunpack.c.l.b16 %v295
  %v335 = vunpack.c.h.b16 %v295
  %v336 = vunpack.c.l.b16 %v296
  %v337 = vunpack.c.h.b16 %v296
  %v338 = vunpack.c.l.b16 %v297
  %v339 = vunpack.c.h.b16 %v297
  %v340 = vunpack.c.l.b16 %v298
  %v341 = vunpack.c.h.b16 %v298
  %v342 = vunpack.c.l.b16 %v299
  %v343 = vunpack.c.h.b16 %v299
  %v344 = vunpack.c.l.b16 %v300
  %v345 = vunpack.c.h.b16 %v300
  %v346 = vunpack.c.l.b16 %v301
  %v347 = vunpack.c.h.b16 %v301
  %v348 = vunpack.c.l.b16 %v302
  %v349 = vunpack.c.h.b16 %v302
  %v350 = vunpack.c.l.b16 %v303
  %v351 = vunpack.c.h.b16 %v303
  %v352 = vunpack.c.l.b16 %v304
  %v353 = vunpack.c.h.b16 %v304
  %v354 = vunpack.c.l.b16 %v305
  %v355 = vunpack.c.h.b16 %v305
  %v356 = vunpack.c.l.b16 %v306
  %v357 = vunpack.c.h.b16 %v306
  %v358 = vpack.c.b16 %v334, %v328
  %v359 = vpack.c.b16 %v335, %v329
  %v360 = vpack.c.b16 %v336, %v330
  %v361 = vpack.c.b16 %v337, %v331
  %v362 = vpack.c.b16 %v338, %v332
  %v363 = vpack.c.b16 %v339, %v333
  %v364 = vpack.c.b16 %v346, %v340
  %v365 = vpack.c.b16 %v347, %v341
  %v366 = vpack.c.b16 %v348, %v342
  %v367 = vpack.c.b16 %v349, %v343
  %v368 = vpack.c.b16 %v350, %v344
  %v369 = vpack.c.b16 %v351, %v345
  %v370 = vpack.c.b16 %v352, %v352
  %v371 = vpack.c.b16 %v353, %v353
  %v372 = vpack.c.b16 %v354, %v354
  %v373 = vpack.c.b16 %v355, %v355
  %v374 = vpack.c.b16 %v356, %v356
  %v375 = vpack.c.b16 %v357, %v357
  %vm388 = vcmask 293888
  %v390 = vsel %vm388, %v291, 0
  %vm392 = vcmask 1041408
  %v394 = vsel %vm392, %v370, 0
  %v397 = vsel %vm392, %v371, 0
  %v400 = vsel %vm392, %v372, 0
  %v403 = vsel %vm392, %v373, 0
  %v406 = vsel %vm392, %v374, 0
  %v409 = vsel %vm392, %v375, 0
  %411 = vmatprep.subr.bf16.mxu0 %v359
  %412 = vmatpush1.bf16.msra.mxu0 %v358
  %413 = vmatprep.subr.bf16.mxu0 %v365
  %414 = vmatpush1.bf16.msra.mxu0 %v364
  %415 = vmatprep.subr.bf16.mxu0 %v397
  %416 = vmatpush1.bf16.msra.mxu0 %v394
  %417 = vmatprep.subr.bf16.mxu0 0
  %418 = vmatpush1.bf16.msra.mxu0 0
  %419 = vmatprep.subr.bf16.mxu0 0
  %420 = vmatpush1.bf16.msra.mxu0 0
  %421 = vmatprep.subr.bf16.mxu0 0
  %422 = vmatpush1.bf16.msra.mxu0 0
  %423 = vmatprep.subr.bf16.mxu0 0
  %424 = vmatpush1.bf16.msra.mxu0 0
  %425 = vmatprep.subr.bf16.mxu0 0
  %426 = vmatpush1.bf16.msra.mxu0 0
  %427 = vmatprep.subr.bf16.mxu0 0
  %428 = vmatpush1.bf16.msra.mxu0 0
  %429 = vmatprep.subr.bf16.mxu0 0
  %430 = vmatpush1.bf16.msra.mxu0 0
  %431 = vmatprep.subr.bf16.mxu0 0
  %432 = vmatpush1.bf16.msra.mxu0 0
  %433 = vmatprep.subr.bf16.mxu0 0
  %434 = vmatpush1.bf16.msra.mxu0 0
  %435 = vmatprep.subr.bf16.mxu0 0
  %436 = vmatpush1.bf16.msra.mxu0 0
  %437 = vmatprep.subr.bf16.mxu0 0
  %438 = vmatpush1.bf16.msra.mxu0 0
  %439 = vmatprep.subr.bf16.mxu0 0
  %440 = vmatpush1.bf16.msra.mxu0 0
  %441 = vmatprep.subr.bf16.mxu0 0
  %442 = vmatpush1.bf16.msra.mxu0 0
  %443 = vmatprep.mubr.bf16.mxu0 0
  %444 = vmatmul.mubr.bf16.gmra.mrb[0].mxu0 %v390
  %v445 = vpop.f32.mrb[0].mxu0
  %v446 = vadd.f32 %v311, %v445
  %v447 = vpop.f32.mrb[0].mxu0
  %v448 = vadd.f32 %v311, %v447
  %v449 = vpop.f32.mrb[0].mxu0
  %v450 = vpop.f32.mrb[0].mxu0
  %451 = vdwg.mxu0
  %452 = vmatprep.subr.bf16.mxu0 %v361
  %453 = vmatpush1.bf16.msra.mxu0 %v360
  %454 = vmatprep.subr.bf16.mxu0 %v367
  %455 = vmatpush1.bf16.msra.mxu0 %v366
  %456 = vmatprep.subr.bf16.mxu0 %v403
  %457 = vmatpush1.bf16.msra.mxu0 %v400
  %458 = vmatprep.subr.bf16.mxu0 0
  %459 = vmatpush1.bf16.msra.mxu0 0
  %460 = vmatprep.subr.bf16.mxu0 0
  %461 = vmatpush1.bf16.msra.mxu0 0
  %462 = vmatprep.subr.bf16.mxu0 0
  %463 = vmatpush1.bf16.msra.mxu0 0
  %464 = vmatprep.subr.bf16.mxu0 0
  %465 = vmatpush1.bf16.msra.mxu0 0
  %466 = vmatprep.subr.bf16.mxu0 0
  %467 = vmatpush1.bf16.msra.mxu0 0
  %468 = vmatprep.subr.bf16.mxu0 0
  %469 = vmatpush1.bf16.msra.mxu0 0
  %470 = vmatprep.subr.bf16.mxu0 0
  %471 = vmatpush1.bf16.msra.mxu0 0
  %472 = vmatprep.subr.bf16.mxu0 0
  %473 = vmatpush1.bf16.msra.mxu0 0
  %474 = vmatprep.subr.bf16.mxu0 0
  %475 = vmatpush1.bf16.msra.mxu0 0
  %476 = vmatprep.subr.bf16.mxu0 0
  %477 = vmatpush1.bf16.msra.mxu0 0
  %478 = vmatprep.subr.bf16.mxu0 0
  %479 = vmatpush1.bf16.msra.mxu0 0
  %480 = vmatprep.subr.bf16.mxu0 0
  %481 = vmatpush1.bf16.msra.mxu0 0
  %482 = vmatprep.subr.bf16.mxu0 0
  %483 = vmatpush1.bf16.msra.mxu0 0
  %484 = vmatprep.mubr.bf16.mxu0 0
  %485 = vmatmul.mubr.bf16.gmra.mrb[0].mxu0 %v390
  %v486 = vpop.f32.mrb[0].mxu0
  %v487 = vadd.f32 %v311, %v486
  %v488 = vpop.f32.mrb[0].mxu0
  %v489 = vadd.f32 %v311, %v488
  %v490 = vpop.f32.mrb[0].mxu0
  %v491 = vpop.f32.mrb[0].mxu0
  %492 = vdwg.mxu0
  %493 = vmatprep.subr.bf16.mxu0 %v363
  %494 = vmatpush1.bf16.msra.mxu0 %v362
  %495 = vmatprep.subr.bf16.mxu0 %v369
  %496 = vmatpush1.bf16.msra.mxu0 %v368
  %497 = vmatprep.subr.bf16.mxu0 %v409
  %498 = vmatpush1.bf16.msra.mxu0 %v406
  %499 = vmatprep.subr.bf16.mxu0 0
  %500 = vmatpush1.bf16.msra.mxu0 0
  %501 = vmatprep.subr.bf16.mxu0 0
  %502 = vmatpush1.bf16.msra.mxu0 0
  %503 = vmatprep.subr.bf16.mxu0 0
  %504 = vmatpush1.bf16.msra.mxu0 0
  %505 = vmatprep.subr.bf16.mxu0 0
  %506 = vmatpush1.bf16.msra.mxu0 0
  %507 = vmatprep.subr.bf16.mxu0 0
  %508 = vmatpush1.bf16.msra.mxu0 0
  %509 = vmatprep.subr.bf16.mxu0 0
  %510 = vmatpush1.bf16.msra.mxu0 0
  %511 = vmatprep.subr.bf16.mxu0 0
  %512 = vmatpush1.bf16.msra.mxu0 0
  %513 = vmatprep.subr.bf16.mxu0 0
  %514 = vmatpush1.bf16.msra.mxu0 0
  %515 = vmatprep.subr.bf16.mxu0 0
  %516 = vmatpush1.bf16.msra.mxu0 0
  %517 = vmatprep.subr.bf16.mxu0 0
  %518 = vmatpush1.bf16.msra.mxu0 0
  %519 = vmatprep.subr.bf16.mxu0 0
  %520 = vmatpush1.bf16.msra.mxu0 0
  %521 = vmatprep.subr.bf16.mxu0 0
  %522 = vmatpush1.bf16.msra.mxu0 0
  %523 = vmatprep.subr.bf16.mxu0 0
  %524 = vmatpush1.bf16.msra.mxu0 0
  %525 = vmatprep.mubr.bf16.mxu0 0
  %526 = vmatmul.mubr.bf16.gmra.mrb[0].mxu0 %v390
  %v527 = vpop.f32.mrb[0].mxu0
  %v528 = vadd.f32 %v311, %v527
  %v529 = vpop.f32.mrb[0].mxu0
  %v530 = vadd.f32 %v311, %v529
  %v531 = vpop.f32.mrb[0].mxu0
  %v532 = vpop.f32.mrb[0].mxu0
  %533 = vdwg.mxu0
  %v534 = vmax.f32 %v446, 0.0
  %v535 = vmax.f32 %v448, 0.0
  %v536 = vmax.f32 %v487, 0.0
  %v537 = vmax.f32 %v489, 0.0
  %v538 = vmax.f32 %v528, 0.0
  %v539 = vmax.f32 %v530, 0.0
  %vm540 = vcmask 130048
  %541 = vst.msk [vmem:[%s3] sm:$0xff] %vm540, %v534
  %543 = vrot.lane.b32.xlu0 %v534, 126
  %v544 = vpop.permute.xlu0 %543
  %vm546 = vcmask 261248
  %547 = vst.msk [vmem:[%s3] sm:$0xff] %vm546, %v544
  %548 = vrot.lane.b32.xlu0 %v534, 124
  %v549 = vpop.permute.xlu0 %548
  %vm551 = vcmask 392448
  %552 = vst.msk [vmem:[%s3] sm:$0xff] %vm551, %v549
  %553 = vrot.lane.b32.xlu0 %v534, 122
  %v554 = vpop.permute.xlu0 %553
  %vm556 = vcmask 523648
  %557 = vst.msk [vmem:[%s3] sm:$0xff] %vm556, %v554
  %558 = vrot.lane.b32.xlu0 %v534, 120
  %v559 = vpop.permute.xlu0 %558
  %vm561 = vcmask 654848
  %562 = vst.msk [vmem:[%s3] sm:$0xff] %vm561, %v559
  %563 = vrot.lane.b32.xlu0 %v534, 118
  %v564 = vpop.permute.xlu0 %563
  %vm566 = vcmask 786048
  %567 = vst.msk [vmem:[%s3] sm:$0xff] %vm566, %v564
  %568 = vrot.lane.b32.xlu0 %v534, 116
  %v569 = vpop.permute.xlu0 %568
  %vm571 = vcmask 917248
  %572 = vst.msk [vmem:[%s3] sm:$0xff] %vm571, %v569
  %574 = vrot.lane.b32.xlu0 %v534, 114
  %v575 = vpop.permute.xlu0 %574
  %576 = vrot.lane.b32.xlu0 %v535, 114
  %v577 = vpop.permute.xlu0 %576
  %vm578 = vcmask 932864
  %v579 = vsel %vm578, %v575, %v577
  %vm581 = vcmask 1048448
  %582 = vst.msk [vmem:[%s3] sm:$0xff] %vm581, %v579
  %583 = vrot.lane.b32.xlu0 %v535, 112
  %v584 = vpop.permute.xlu0 %583
  %586 = vst.msk [vmem:[%s3 + $0x8] sm:$0xff] %vm540, %v584
  %587 = vrot.lane.b32.xlu0 %v535, 110
  %v588 = vpop.permute.xlu0 %587
  %590 = vst.msk [vmem:[%s3 + $0x8] sm:$0xff] %vm546, %v588
  %591 = vrot.lane.b32.xlu0 %v535, 108
  %v592 = vpop.permute.xlu0 %591
  %594 = vst.msk [vmem:[%s3 + $0x8] sm:$0xff] %vm551, %v592
  %595 = vrot.lane.b32.xlu0 %v535, 106
  %v596 = vpop.permute.xlu0 %595
  %598 = vst.msk [vmem:[%s3 + $0x8] sm:$0xff] %vm556, %v596
  %599 = vrot.lane.b32.xlu0 %v535, 104
  %v600 = vpop.permute.xlu0 %599
  %602 = vst.msk [vmem:[%s3 + $0x8] sm:$0xff] %vm561, %v600
  %603 = vrot.lane.b32.xlu0 %v535, 102
  %v604 = vpop.permute.xlu0 %603
  %606 = vst.msk [vmem:[%s3 + $0x8] sm:$0xff] %vm566, %v604
  %608 = vrot.lane.b32.xlu0 %v535, 100
  %v609 = vpop.permute.xlu0 %608
  %610 = vrot.lane.b32.xlu0 %v536, 100
  %v611 = vpop.permute.xlu0 %610
  %vm612 = vcmask 818176
  %v613 = vsel %vm612, %v609, %v611
  %615 = vst.msk [vmem:[%s3 + $0x8] sm:$0xff] %vm571, %v613
  %616 = vrot.lane.b32.xlu0 %v536, 98
  %v617 = vpop.permute.xlu0 %616
  %619 = vst.msk [vmem:[%s3 + $0x8] sm:$0xff] %vm581, %v617
  %s620 = scalar_lea.vmem %s3, 16
  %621 = vst.msk [vmem:[%s620] sm:$0xff] %vm540, %v537
  %623 = vrot.lane.b32.xlu0 %v537, 126
  %v624 = vpop.permute.xlu0 %623
  %626 = vst.msk [vmem:[%s620] sm:$0xff] %vm546, %v624
  %627 = vrot.lane.b32.xlu0 %v537, 124
  %v628 = vpop.permute.xlu0 %627
  %630 = vst.msk [vmem:[%s620] sm:$0xff] %vm551, %v628
  %631 = vrot.lane.b32.xlu0 %v537, 122
  %v632 = vpop.permute.xlu0 %631
  %634 = vst.msk [vmem:[%s620] sm:$0xff] %vm556, %v632
  %635 = vrot.lane.b32.xlu0 %v537, 120
  %v636 = vpop.permute.xlu0 %635
  %638 = vst.msk [vmem:[%s620] sm:$0xff] %vm561, %v636
  %639 = vrot.lane.b32.xlu0 %v537, 118
  %v640 = vpop.permute.xlu0 %639
  %642 = vst.msk [vmem:[%s620] sm:$0xff] %vm566, %v640
  %643 = vrot.lane.b32.xlu0 %v537, 116
  %v644 = vpop.permute.xlu0 %643
  %646 = vst.msk [vmem:[%s620] sm:$0xff] %vm571, %v644
  %648 = vrot.lane.b32.xlu0 %v537, 114
  %v649 = vpop.permute.xlu0 %648
  %650 = vrot.lane.b32.xlu0 %v538, 114
  %v651 = vpop.permute.xlu0 %650
  %v652 = vsel %vm578, %v649, %v651
  %654 = vst.msk [vmem:[%s620] sm:$0xff] %vm581, %v652
  %655 = vrot.lane.b32.xlu0 %v538, 112
  %v656 = vpop.permute.xlu0 %655
  %658 = vst.msk [vmem:[%s620 + $0x8] sm:$0xff] %vm540, %v656
  %659 = vrot.lane.b32.xlu0 %v538, 110
  %v660 = vpop.permute.xlu0 %659
  %662 = vst.msk [vmem:[%s620 + $0x8] sm:$0xff] %vm546, %v660
  %663 = vrot.lane.b32.xlu0 %v538, 108
  %v664 = vpop.permute.xlu0 %663
  %666 = vst.msk [vmem:[%s620 + $0x8] sm:$0xff] %vm551, %v664
  %667 = vrot.lane.b32.xlu0 %v538, 106
  %v668 = vpop.permute.xlu0 %667
  %670 = vst.msk [vmem:[%s620 + $0x8] sm:$0xff] %vm556, %v668
  %671 = vrot.lane.b32.xlu0 %v538, 104
  %v672 = vpop.permute.xlu0 %671
  %674 = vst.msk [vmem:[%s620 + $0x8] sm:$0xff] %vm561, %v672
  %675 = vrot.lane.b32.xlu0 %v538, 102
  %v676 = vpop.permute.xlu0 %675
  %678 = vst.msk [vmem:[%s620 + $0x8] sm:$0xff] %vm566, %v676
  %680 = vrot.lane.b32.xlu0 %v538, 100
  %v681 = vpop.permute.xlu0 %680
  %682 = vrot.lane.b32.xlu0 %v539, 100
  %v683 = vpop.permute.xlu0 %682
  %v684 = vsel %vm612, %v681, %v683
  %686 = vst.msk [vmem:[%s620 + $0x8] sm:$0xff] %vm571, %v684
  %687 = vrot.lane.b32.xlu0 %v539, 98
  %v688 = vpop.permute.xlu0 %687
  %690 = vst.msk [vmem:[%s620 + $0x8] sm:$0xff] %vm581, %v688
  // Predicated region
  $region14: #{conv_relu.1} parent=0 // pred_check
    _
  $region15: #{conv_relu.1} parent=0 // pred_check_branch
    %692 = sbr.rel (0) target = $region17
  $region16: #{conv_relu.1} parent=0 // pred_region
    _
  $region17: #{conv_relu.1} parent=0 // pred_fallthru
    _
  // Predicated region
  $region18: #{conv_relu.1} parent=0 // pred_check
    _
  $region19: #{conv_relu.1} parent=0 // pred_check_branch
    %694 = sbr.rel (0) target = $region21
  $region20: #{conv_relu.1} parent=0 // pred_region
    _
  $region21: #{conv_relu.1} parent=0 // pred_fallthru
    _

</llo_original>
